<compile_context>
chip_gen: v7x
topology: tpu7x:2x2x1
jax: 0.10.0
libtpu: 0.0.40
codegen_flags: <defaults>
</compile_context>

<pallas_src>
import functools

import jax
import jax.numpy as jnp
from jax.experimental import pallas as pl
from jax.experimental.pallas import tpu as pltpu

# Toy shapes consistent with the module structure (nh1 = nin*5, nh2, nz):
# the real model uses nin = 28*28 = 784; here the image is 1x8x8 so nin = 64.
NIN = 8 * 8            # 64
NH1 = NIN * 5          # 320
NH2 = 40
NZ = 20

# Lane-padded widths (multiples of 128): lane-dense outputs, full MXU tiles.
NH1_P = 384
NH2_P = 128
NZ_P = 128


def _round_up(x, m):
    return (x + m - 1) // m * m


def encoder_kernel(x_ref, w1_ref, b1_ref, w2_ref, b2_ref, w3_ref, b3_ref, o_ref):
    """Fused MLP: Linear -> ReLU -> Linear -> ReLU -> Linear.

    bf16 activations/weights on the MXU, f32 accumulation, f32 biases/output.
    """
    x = x_ref[...]
    h1 = jnp.dot(x, w1_ref[...], preferred_element_type=jnp.float32) + b1_ref[...]
    h1 = jnp.maximum(h1, 0.0).astype(jnp.bfloat16)
    h2 = jnp.dot(h1, w2_ref[...], preferred_element_type=jnp.float32) + b2_ref[...]
    h2 = jnp.maximum(h2, 0.0).astype(jnp.bfloat16)
    o_ref[...] = (
        jnp.dot(h2, w3_ref[...], preferred_element_type=jnp.float32) + b3_ref[...]
    )


def _choose_batch_tile(B):
    # 512 rows amortize the ~0.35us per-step overhead, are a multiple of the
    # 256-wide v6e/v7x MXU (and 128-wide v5e), and keep the double-buffered
    # x/out tiles plus f32 intermediates (h1: 512*384*4 ~ 0.75 MiB) far below
    # the scoped-VMEM default on every generation, including v7x's 64 MiB part.
    if B <= 512:
        return _round_up(B, 8)
    return 512


def init_params(key):
    """Deterministic synthetic params, shapes matching the nn.Linear layers.

    Stored as (in, out) so the kernel does y = x @ W + b (PyTorch stores (out, in))."""
    ks = jax.random.split(key, 6)

    def lin(kw, kb, fan_in, fan_out):
        bound = 1.0 / jnp.sqrt(fan_in)
        w = jax.random.uniform(kw, (fan_in, fan_out), jnp.float32, -bound, bound)
        b = jax.random.uniform(kb, (1, fan_out), jnp.float32, -bound, bound)
        return w, b

    w1, b1 = lin(ks[0], ks[1], NIN, NH1)
    w2, b2 = lin(ks[2], ks[3], NH1, NH2)
    w3, b3 = lin(ks[4], ks[5], NH2, NZ)
    return (w1, b1, w2, b2, w3, b3)


def prepare_params(params):
    """Zero-pad weights/biases to lane-multiple widths; cast weights to bf16.

    Zero columns/rows are numerically inert: padded h1/h2 features are
    ReLU(0 + 0) = 0 and multiply zero rows downstream; padded output columns
    are sliced off in the wrapper."""
    w1, b1, w2, b2, w3, b3 = params

    def pad(a, shape):
        out = jnp.zeros(shape, a.dtype)
        return out.at[: a.shape[0], : a.shape[1]].set(a)

    w1p = pad(w1, (NIN, NH1_P)).astype(jnp.bfloat16)
    b1p = pad(b1, (1, NH1_P)).astype(jnp.float32)
    w2p = pad(w2, (NH1_P, NH2_P)).astype(jnp.bfloat16)
    b2p = pad(b2, (1, NH2_P)).astype(jnp.float32)
    w3p = pad(w3, (NH2_P, NZ_P)).astype(jnp.bfloat16)
    b3p = pad(b3, (1, NZ_P)).astype(jnp.float32)
    return (w1p, b1p, w2p, b2p, w3p, b3p)


@functools.partial(jax.jit, static_argnames=("batch_tile",))
def encoder_forward(x_nchw, padded_params, *, batch_tile=None):
    """Pallas implementation of Encoder.forward: main(input.view(-1, nin))."""
    w1, b1, w2, b2, w3, b3 = padded_params
    x2d = x_nchw.reshape(-1, NIN).astype(jnp.bfloat16)   # input.view(-1, nin)
    B = x2d.shape[0]
    tb = _choose_batch_tile(B) if batch_tile is None else batch_tile
    B_pad = _round_up(B, tb)
    if B_pad != B:
        x2d = jnp.pad(x2d, ((0, B_pad - B), (0, 0)))

    const = lambda i: (0, 0)
    out = pl.pallas_call(
        encoder_kernel,
        out_shape=jax.ShapeDtypeStruct((B_pad, NZ_P), jnp.float32),
        grid_spec=pl.GridSpec(
            grid=(B_pad // tb,),
            in_specs=[
                pl.BlockSpec((tb, NIN), lambda i: (i, 0)),   # streamed over batch
                pl.BlockSpec((NIN, NH1_P), const),           # weights: VMEM-resident
                pl.BlockSpec((1, NH1_P), const),
                pl.BlockSpec((NH1_P, NH2_P), const),
                pl.BlockSpec((1, NH2_P), const),
                pl.BlockSpec((NH2_P, NZ_P), const),
                pl.BlockSpec((1, NZ_P), const),
            ],
            out_specs=pl.BlockSpec((tb, NZ_P), lambda i: (i, 0)),
        ),
        compiler_params=pltpu.CompilerParams(
            dimension_semantics=("parallel",),
        ),
    )(x2d, w1, b1, w2, b2, w3, b3)
    return out[:B, :NZ]


def encoder_ref(x_nchw, params):
    """Pure-JAX reference mirroring the kernel's bf16 input quantization."""
    w1, b1, w2, b2, w3, b3 = params
    q = lambda a: a.astype(jnp.bfloat16).astype(jnp.float32)
    x = q(x_nchw.reshape(-1, NIN))
    h1 = jnp.maximum(x @ q(w1) + b1, 0.0)
    h2 = jnp.maximum(q(h1) @ q(w2) + b2, 0.0)
    return q(h2) @ q(w3) + b3


if __name__ == "__main__":
    key = jax.random.PRNGKey(0)
    k_x, k_p = jax.random.split(key)
    # Small NCHW input (batch=8, channels=1, spatial=8x8) -> view(-1, 64)
    x = jax.random.normal(k_x, (8, 1, 8, 8), jnp.float32)
    params = init_params(k_p)
    padded_params = prepare_params(params)

    out = encoder_forward(x, padded_params)
    out = jax.block_until_ready(out)

    ref = encoder_ref(x, params)
    assert out.shape == (8, NZ)
    err = float(jnp.max(jnp.abs(out - ref)))
    assert jnp.allclose(out, ref, atol=1e-2, rtol=1e-2), err
    print("KERNEL_OK")
</pallas_src>

<mosaic_0001>
module attributes {stable_mosaic.version = 11 : i64} {
  func.func @encoder_kernel(%arg0: i32, %arg1: memref<8x64xbf16, #tpu.memory_space<vmem>>, %arg2: memref<64x384xbf16, #tpu.memory_space<vmem>>, %arg3: memref<1x384xf32, #tpu.memory_space<vmem>>, %arg4: memref<384x128xbf16, #tpu.memory_space<vmem>>, %arg5: memref<1x128xf32, #tpu.memory_space<vmem>>, %arg6: memref<128x128xbf16, #tpu.memory_space<vmem>>, %arg7: memref<1x128xf32, #tpu.memory_space<vmem>>, %arg8: memref<8x128xf32, #tpu.memory_space<vmem>>) attributes {dimension_semantics = [#tpu.dimension_semantics<parallel>], iteration_bounds = array<i64: 1>, scalar_prefetch = 0 : i64, scratch_operands = 0 : i64, tpu.core_type = #tpu.core_type<tc>, window_params = [{transform_indices = @transform_0, window_bounds = array<i64: 8, 64>}, {pipeline_mode = #tpu.pipeline_mode<synchronous>, transform_indices = @transform_1, window_bounds = array<i64: 64, 384>}, {pipeline_mode = #tpu.pipeline_mode<synchronous>, transform_indices = @transform_2, window_bounds = array<i64: 1, 384>}, {pipeline_mode = #tpu.pipeline_mode<synchronous>, transform_indices = @transform_3, window_bounds = array<i64: 384, 128>}, {pipeline_mode = #tpu.pipeline_mode<synchronous>, transform_indices = @transform_4, window_bounds = array<i64: 1, 128>}, {pipeline_mode = #tpu.pipeline_mode<synchronous>, transform_indices = @transform_5, window_bounds = array<i64: 128, 128>}, {pipeline_mode = #tpu.pipeline_mode<synchronous>, transform_indices = @transform_6, window_bounds = array<i64: 1, 128>}, {transform_indices = @transform_7, window_bounds = array<i64: 8, 128>}]} {
    %c0 = arith.constant 0 : index
    %c0_0 = arith.constant 0 : index
    %0 = vector.load %arg1[%c0, %c0_0] : memref<8x64xbf16, #tpu.memory_space<vmem>>, vector<8x64xbf16>
    %c0_1 = arith.constant 0 : index
    %c0_2 = arith.constant 0 : index
    %1 = vector.load %arg2[%c0_1, %c0_2] : memref<64x384xbf16, #tpu.memory_space<vmem>>, vector<64x384xbf16>
    %cst = arith.constant dense<0.000000e+00> : vector<8x384xf32>
    %2 = tpu.matmul %0, %1, %cst {dimension_numbers = #tpu.dot_dimension_numbers<[1], [0], [0], [1], [0, 0, 1, 1], [], []>} : vector<8x64xbf16>, vector<64x384xbf16>, vector<8x384xf32> -> vector<8x384xf32>
    %c0_3 = arith.constant 0 : index
    %c0_4 = arith.constant 0 : index
    %3 = vector.load %arg3[%c0_3, %c0_4] : memref<1x384xf32, #tpu.memory_space<vmem>>, vector<1x384xf32>
    %4 = vector.broadcast %3 : vector<1x384xf32> to vector<8x384xf32>
    %5 = arith.addf %2, %4 : vector<8x384xf32>
    %cst_5 = arith.constant 0.000000e+00 : f32
    %6 = vector.broadcast %cst_5 : f32 to vector<8x384xf32>
    %7 = arith.maximumf %5, %6 : vector<8x384xf32>
    %8 = arith.truncf %7 : vector<8x384xf32> to vector<8x384xbf16>
    %c0_6 = arith.constant 0 : index
    %c0_7 = arith.constant 0 : index
    %9 = vector.load %arg4[%c0_6, %c0_7] : memref<384x128xbf16, #tpu.memory_space<vmem>>, vector<384x128xbf16>
    %cst_8 = arith.constant dense<0.000000e+00> : vector<8x128xf32>
    %10 = tpu.matmul %8, %9, %cst_8 {dimension_numbers = #tpu.dot_dimension_numbers<[1], [0], [0], [1], [0, 0, 1, 1], [], []>} : vector<8x384xbf16>, vector<384x128xbf16>, vector<8x128xf32> -> vector<8x128xf32>
    %c0_9 = arith.constant 0 : index
    %c0_10 = arith.constant 0 : index
    %11 = vector.load %arg5[%c0_9, %c0_10] : memref<1x128xf32, #tpu.memory_space<vmem>>, vector<1x128xf32>
    %12 = vector.broadcast %11 : vector<1x128xf32> to vector<8x128xf32>
    %13 = arith.addf %10, %12 : vector<8x128xf32>
    %cst_11 = arith.constant 0.000000e+00 : f32
    %14 = vector.broadcast %cst_11 : f32 to vector<8x128xf32>
    %15 = arith.maximumf %13, %14 : vector<8x128xf32>
    %16 = arith.truncf %15 : vector<8x128xf32> to vector<8x128xbf16>
    %c0_12 = arith.constant 0 : index
    %c0_13 = arith.constant 0 : index
    %17 = vector.load %arg6[%c0_12, %c0_13] : memref<128x128xbf16, #tpu.memory_space<vmem>>, vector<128x128xbf16>
    %cst_14 = arith.constant dense<0.000000e+00> : vector<8x128xf32>
    %18 = tpu.matmul %16, %17, %cst_14 {dimension_numbers = #tpu.dot_dimension_numbers<[1], [0], [0], [1], [0, 0, 1, 1], [], []>} : vector<8x128xbf16>, vector<128x128xbf16>, vector<8x128xf32> -> vector<8x128xf32>
    %c0_15 = arith.constant 0 : index
    %c0_16 = arith.constant 0 : index
    %19 = vector.load %arg7[%c0_15, %c0_16] : memref<1x128xf32, #tpu.memory_space<vmem>>, vector<1x128xf32>
    %20 = vector.broadcast %19 : vector<1x128xf32> to vector<8x128xf32>
    %21 = arith.addf %18, %20 : vector<8x128xf32>
    %c0_17 = arith.constant 0 : index
    %c0_18 = arith.constant 0 : index
    %22 = vector.load %arg8[%c0_17, %c0_18] : memref<8x128xf32, #tpu.memory_space<vmem>>, vector<8x128xf32>
    tpu.vector_store %arg8[%c0_17, %c0_18], %21 {strides = array<i32>} : memref<8x128xf32, #tpu.memory_space<vmem>>, vector<8x128xf32>,
    return
  }
  func.func @transform_0(%arg0: i32) -> (i32, i32) {
    %c0_i32 = arith.constant 0 : i32
    %c0_i32_0 = arith.constant 0 : i32
    return %arg0, %c0_i32 : i32, i32
  }
  func.func @transform_1(%arg0: i32) -> (i32, i32) {
    %c0_i32 = arith.constant 0 : i32
    %c0_i32_0 = arith.constant 0 : i32
    %c0_i32_1 = arith.constant 0 : i32
    return %c0_i32, %c0_i32_0 : i32, i32
  }
  func.func @transform_2(%arg0: i32) -> (i32, i32) {
    %c0_i32 = arith.constant 0 : i32
    %c0_i32_0 = arith.constant 0 : i32
    %c0_i32_1 = arith.constant 0 : i32
    return %c0_i32, %c0_i32_0 : i32, i32
  }
  func.func @transform_3(%arg0: i32) -> (i32, i32) {
    %c0_i32 = arith.constant 0 : i32
    %c0_i32_0 = arith.constant 0 : i32
    %c0_i32_1 = arith.constant 0 : i32
    return %c0_i32, %c0_i32_0 : i32, i32
  }
  func.func @transform_4(%arg0: i32) -> (i32, i32) {
    %c0_i32 = arith.constant 0 : i32
    %c0_i32_0 = arith.constant 0 : i32
    %c0_i32_1 = arith.constant 0 : i32
    return %c0_i32, %c0_i32_0 : i32, i32
  }
  func.func @transform_5(%arg0: i32) -> (i32, i32) {
    %c0_i32 = arith.constant 0 : i32
    %c0_i32_0 = arith.constant 0 : i32
    %c0_i32_1 = arith.constant 0 : i32
    return %c0_i32, %c0_i32_0 : i32, i32
  }
  func.func @transform_6(%arg0: i32) -> (i32, i32) {
    %c0_i32 = arith.constant 0 : i32
    %c0_i32_0 = arith.constant 0 : i32
    %c0_i32_1 = arith.constant 0 : i32
    return %c0_i32, %c0_i32_0 : i32, i32
  }
  func.func @transform_7(%arg0: i32) -> (i32, i32) {
    %c0_i32 = arith.constant 0 : i32
    %c0_i32_0 = arith.constant 0 : i32
    return %arg0, %c0_i32 : i32, i32
  }
}

</mosaic_0001>

<llo_original>
// kernel: encoder_forward.1
$region0: #{encoder_forward.1}
  #allocation0 [shape = 'u32[]', space=smem, size = 0x4, offset = 0x4, fixed_abs, tag = 'smem constant byte address 0x4 - core index']
  #allocation1 [shape = 'u32[144,128]{1,0:T(1,128)}', space=vmem, size = 0x12000, scoped, tag = 'internal scratch']
  %s0 = inlined_call_operand.vmem [shape: bf16[8,64], index: 0, kind: input, shape index: {}]
  %s1 = inlined_call_operand.vmem [shape: bf16[64,384], index: 1, kind: input, shape index: {}]
  %s2 = inlined_call_operand.vmem [shape: f32[1,384], index: 2, kind: input, shape index: {}]
  %s3 = inlined_call_operand.hbm [shape: bf16[384,128], index: 3, kind: input, shape index: {}]
  %s4 = inlined_call_operand.vmem [shape: f32[1,128], index: 4, kind: input, shape index: {}]
  %s5 = inlined_call_operand.hbm [shape: bf16[128,128], index: 5, kind: input, shape index: {}]
  %s6 = inlined_call_operand.vmem [shape: f32[1,128], index: 6, kind: input, shape index: {}]
  %s7 = inlined_call_operand.hbm [shape: f32[8,128], index: 7, kind: output, shape index: {}]
  %s8 = sld [smem:[#allocation0]]
  $region46: #{encoder_forward.1} parent=0
    _
  %s10 = ssub.s32 1, %s8
  %s11 = scalar_select 0, %s10, %s8
  $region1: #{encoder_forward.1} parent=0
    #allocation2 [shape = 'u8[98304]{0}', space=vmem, size = 0x18000, scoped, tag = 'input window, operand 3, single buffered']
    #allocation3 [shape = 's32[1]{0}', space=sflag, size = 0x4, scoped, tag = 'scoped memory for encoder_forward.1']
    #allocation4 [shape = 's32[1]{0}', space=sflag, size = 0x4, scoped, tag = 'scoped memory for encoder_forward.1']
    #allocation5 [shape = 'u8[32768]{0}', space=vmem, size = 0x8000, scoped, tag = 'input window, operand 5, single buffered']
    #allocation6 [shape = 's32[1]{0}', space=sflag, size = 0x4, scoped, tag = 'scoped memory for encoder_forward.1']
    #allocation7 [shape = 'u8[4096]{0}', space=vmem, size = 0x1000, scoped, tag = 'output window, operand 0, single buffered']
    %12 = vsyncpa [#allocation3], 0
    %13 = vsyncpa [#allocation6], 0
    %14 = vsyncpa [#allocation4], 0
    // Predicated region
    $region2: #{encoder_forward.1} parent=1 // pred_check
      _
    $region3: #{encoder_forward.1} parent=1 // pred_check_branch
      %16 = sbr.rel (0) target = $region5
    $region4: #{encoder_forward.1} parent=1 // pred_region
      _
    $region5: #{encoder_forward.1} parent=1 // pred_fallthru
      _
    // Predicated region
    $region6: #{encoder_forward.1} parent=1 // pred_check
      _
    $region7: #{encoder_forward.1} parent=1 // pred_check_branch
      %18 = sbr.rel (0) target = $region9
    $region8: #{encoder_forward.1} parent=1 // pred_region
      _
    $region9: #{encoder_forward.1} parent=1 // pred_fallthru
      _
    // Predicated region
    $region10: #{encoder_forward.1} parent=1 // pred_check
      _
    $region11: #{encoder_forward.1} parent=1 // pred_check_branch
      %20 = sbr.rel (0) target = $region13
    $region12: #{encoder_forward.1} parent=1 // pred_region
      _
    $region13: #{encoder_forward.1} parent=1 // pred_fallthru
      _
    // Predicated region
    $region14: #{encoder_forward.1} parent=1 // pred_check
      _
    $region15: #{encoder_forward.1} parent=1 // pred_check_branch
      %22 = sbr.rel (0) target = $region17
    $region16: #{encoder_forward.1} parent=1 // pred_region
      %s24 = ssub.s32 3072, 3072
      %25 = vsyncadd [#allocation3], %s24
      %s26 = sshll.u32 [#allocation2], 4
      %s27 = int_to_ptr.vmem [resolvable:$true] %s26
      %32 = dma.hbm_to_vmem [thread:$0]  %s3, 3072, %s27, [#allocation3], 64, 64, 4
    $region17: #{encoder_forward.1} parent=1 // pred_fallthru
      _
    // Predicated region
    $region18: #{encoder_forward.1} parent=1 // pred_check
      _
    $region19: #{encoder_forward.1} parent=1 // pred_check_branch
      %34 = sbr.rel (0) target = $region21
    $region20: #{encoder_forward.1} parent=1 // pred_region
      _
    $region21: #{encoder_forward.1} parent=1 // pred_fallthru
      _
    // Predicated region
    $region22: #{encoder_forward.1} parent=1 // pred_check
      _
    $region23: #{encoder_forward.1} parent=1 // pred_check_branch
      %36 = sbr.rel (0) target = $region25
    $region24: #{encoder_forward.1} parent=1 // pred_region
      %s38 = ssub.s32 1024, 1024
      %39 = vsyncadd [#allocation6], %s38
      %s40 = sshll.u32 [#allocation5], 4
      %s41 = int_to_ptr.vmem [resolvable:$true] %s40
      %46 = dma.hbm_to_vmem [thread:$0]  %s5, 1024, %s41, [#allocation6], 64, 64, 4
    $region25: #{encoder_forward.1} parent=1 // pred_fallthru
      _
    // Predicated region
    $region26: #{encoder_forward.1} parent=1 // pred_check
      _
    $region27: #{encoder_forward.1} parent=1 // pred_check_branch
      %48 = sbr.rel (0) target = $region29
    $region28: #{encoder_forward.1} parent=1 // pred_region
      _
    $region29: #{encoder_forward.1} parent=1 // pred_fallthru
      _
    // Predicated region
    $region30: #{encoder_forward.1} parent=1 // pred_check
      _
    $region31: #{encoder_forward.1} parent=1 // pred_check_branch
      %50 = sbr.rel (0) target = $region33
    $region32: #{encoder_forward.1} parent=1 // pred_region
      %51 = dma.done [#allocation3], 3072
    $region33: #{encoder_forward.1} parent=1 // pred_fallthru
      _
    // Predicated region
    $region34: #{encoder_forward.1} parent=1 // pred_check
      _
    $region35: #{encoder_forward.1} parent=1 // pred_check_branch
      %53 = sbr.rel (0) target = $region37
    $region36: #{encoder_forward.1} parent=1 // pred_region
      %54 = dma.done [#allocation6], 1024
    $region37: #{encoder_forward.1} parent=1 // pred_fallthru
      _
    %v56 = vld [vmem:[%s0] sm:$0xf]
    %v57 = vld [vmem:[%s1] sm:$0xff]
    %v58 = vld [vmem:[%s1 + $0x8] sm:$0xf]
    %v59 = vld [vmem:[%s1 + $0xc] sm:$0xff]
    %v60 = vld [vmem:[%s1 + $0x14] sm:$0xf]
    %v61 = vld [vmem:[%s1 + $0x18] sm:$0xff]
    %v62 = vld [vmem:[%s1 + $0x20] sm:$0xf]
    %v63 = vld [vmem:[%s1 + $0x24] sm:$0xff]
    %v64 = vld [vmem:[%s1 + $0x2c] sm:$0xf]
    %v65 = vld [vmem:[%s1 + $0x30] sm:$0xff]
    %v66 = vld [vmem:[%s1 + $0x38] sm:$0xf]
    %v67 = vld [vmem:[%s1 + $0x3c] sm:$0xff]
    %v68 = vld [vmem:[%s1 + $0x44] sm:$0xf]
    %v69 = vld [vmem:[%s1 + $0x48] sm:$0xff]
    %v70 = vld [vmem:[%s1 + $0x50] sm:$0xf]
    %v71 = vld [vmem:[%s1 + $0x54] sm:$0xff]
    %v72 = vld [vmem:[%s1 + $0x5c] sm:$0xf]
    %v73 = vld [vmem:[%s2] sm:$0x7]
    %v75 = vlaneseq
    %v76 = vshrl.u32 %v75, 7
    %v77 = vsub.s32 0, %v76
    %v78 = vrot.slane %v73, %v77
    %v79 = vlaneseq
    %v80 = vshrl.u32 %v79, 7
    %v81 = vsub.s32 1, %v80
    %v82 = vrot.slane %v73, %v81
    %v83 = vlaneseq
    %v84 = vshrl.u32 %v83, 7
    %v85 = vsub.s32 2, %v84
    %v86 = vrot.slane %v73, %v85
    %v106 = vunpack.c.l.b16 %v57
    %v107 = vunpack.c.h.b16 %v57
    %v108 = vunpack.c.l.b16 %v58
    %v109 = vunpack.c.l.b16 %v59
    %v110 = vunpack.c.h.b16 %v59
    %v111 = vunpack.c.l.b16 %v60
    %v112 = vunpack.c.l.b16 %v61
    %v113 = vunpack.c.h.b16 %v61
    %v114 = vunpack.c.l.b16 %v62
    %v115 = vunpack.c.l.b16 %v63
    %v116 = vunpack.c.h.b16 %v63
    %v117 = vunpack.c.l.b16 %v64
    %v118 = vunpack.c.l.b16 %v65
    %v119 = vunpack.c.h.b16 %v65
    %v120 = vunpack.c.l.b16 %v66
    %v121 = vunpack.c.l.b16 %v67
    %v122 = vunpack.c.h.b16 %v67
    %v123 = vunpack.c.l.b16 %v68
    %v124 = vunpack.c.l.b16 %v69
    %v125 = vunpack.c.h.b16 %v69
    %v126 = vunpack.c.l.b16 %v70
    %v127 = vunpack.c.l.b16 %v71
    %v128 = vunpack.c.h.b16 %v71
    %v129 = vunpack.c.l.b16 %v72
    %v130 = vpack.c.b16 %v109, %v106
    %v131 = vpack.c.b16 %v110, %v107
    %v132 = vpack.c.b16 %v111, %v108
    %v133 = vpack.c.b16 %v115, %v112
    %v134 = vpack.c.b16 %v116, %v113
    %v135 = vpack.c.b16 %v117, %v114
    %v136 = vpack.c.b16 %v121, %v118
    %v137 = vpack.c.b16 %v122, %v119
    %v138 = vpack.c.b16 %v123, %v120
    %v139 = vpack.c.b16 %v127, %v124
    %v140 = vpack.c.b16 %v128, %v125
    %v141 = vpack.c.b16 %v129, %v126
    %vm154 = vcmask 523264
    %v156 = vsel %vm154, %v56, 0
    %158 = vmatprep.subr.bf16.mxu0 %v131
    %159 = vmatpush1.bf16.msra.mxu0 %v130
    %160 = vmatprep.subr.bf16.mxu0 %v134
    %161 = vmatpush1.bf16.msra.mxu0 %v133
    %162 = vmatprep.subr.bf16.mxu0 %v137
    %163 = vmatpush1.bf16.msra.mxu0 %v136
    %164 = vmatprep.subr.bf16.mxu0 %v140
    %165 = vmatpush1.bf16.msra.mxu0 %v139
    %166 = vmatprep.subr.bf16.mxu0 0
    %167 = vmatpush1.bf16.msra.mxu0 0
    %168 = vmatprep.subr.bf16.mxu0 0
    %169 = vmatpush1.bf16.msra.mxu0 0
    %170 = vmatprep.subr.bf16.mxu0 0
    %171 = vmatpush1.bf16.msra.mxu0 0
    %172 = vmatprep.subr.bf16.mxu0 0
    %173 = vmatpush1.bf16.msra.mxu0 0
    %174 = vmatprep.subr.bf16.mxu0 0
    %175 = vmatpush1.bf16.msra.mxu0 0
    %176 = vmatprep.subr.bf16.mxu0 0
    %177 = vmatpush1.bf16.msra.mxu0 0
    %178 = vmatprep.subr.bf16.mxu0 0
    %179 = vmatpush1.bf16.msra.mxu0 0
    %180 = vmatprep.subr.bf16.mxu0 0
    %181 = vmatpush1.bf16.msra.mxu0 0
    %182 = vmatprep.subr.bf16.mxu0 0
    %183 = vmatpush1.bf16.msra.mxu0 0
    %184 = vmatprep.subr.bf16.mxu0 0
    %185 = vmatpush1.bf16.msra.mxu0 0
    %186 = vmatprep.subr.bf16.mxu0 0
    %187 = vmatpush1.bf16.msra.mxu0 0
    %188 = vmatprep.subr.bf16.mxu0 0
    %189 = vmatpush1.bf16.msra.mxu0 0
    %190 = vmatprep.mubr.bf16.mxu0 0
    %191 = vmatmul.mubr.bf16.gmra.mrb[0].mxu0 %v156
    %v192 = vpop.f32.mrb[0].mxu0
    %v193 = vadd.f32 %v78, %v192
    %v194 = vpop.f32.mrb[0].mxu0
    %v195 = vadd.f32 %v82, %v194
    %v196 = vpop.f32.mrb[0].mxu0
    %v197 = vpop.f32.mrb[0].mxu0
    %198 = vdwg.mxu0
    %199 = vmatprep.subr.bf16.mxu0 0
    %200 = vmatpush1.bf16.msra.mxu0 %v132
    %201 = vmatprep.subr.bf16.mxu0 0
    %202 = vmatpush1.bf16.msra.mxu0 %v135
    %203 = vmatprep.subr.bf16.mxu0 0
    %204 = vmatpush1.bf16.msra.mxu0 %v138
    %205 = vmatprep.subr.bf16.mxu0 0
    %206 = vmatpush1.bf16.msra.mxu0 %v141
    %207 = vmatprep.subr.bf16.mxu0 0
    %208 = vmatpush1.bf16.msra.mxu0 0
    %209 = vmatprep.subr.bf16.mxu0 0
    %210 = vmatpush1.bf16.msra.mxu0 0
    %211 = vmatprep.subr.bf16.mxu0 0
    %212 = vmatpush1.bf16.msra.mxu0 0
    %213 = vmatprep.subr.bf16.mxu0 0
    %214 = vmatpush1.bf16.msra.mxu0 0
    %215 = vmatprep.subr.bf16.mxu0 0
    %216 = vmatpush1.bf16.msra.mxu0 0
    %217 = vmatprep.subr.bf16.mxu0 0
    %218 = vmatpush1.bf16.msra.mxu0 0
    %219 = vmatprep.subr.bf16.mxu0 0
    %220 = vmatpush1.bf16.msra.mxu0 0
    %221 = vmatprep.subr.bf16.mxu0 0
    %222 = vmatpush1.bf16.msra.mxu0 0
    %223 = vmatprep.subr.bf16.mxu0 0
    %224 = vmatpush1.bf16.msra.mxu0 0
    %225 = vmatprep.subr.bf16.mxu0 0
    %226 = vmatpush1.bf16.msra.mxu0 0
    %227 = vmatprep.subr.bf16.mxu0 0
    %228 = vmatpush1.bf16.msra.mxu0 0
    %229 = vmatprep.subr.bf16.mxu0 0
    %230 = vmatpush1.bf16.msra.mxu0 0
    %231 = vmatprep.mubr.bf16.mxu0 0
    %232 = vmatmul.mubr.bf16.gmra.mrb[0].mxu0 %v156
    %v233 = vpop.f32.mrb[0].mxu0
    %v234 = vadd.f32 %v86, %v233
    %v235 = vpop.f32.mrb[0].mxu0
    %v236 = vpop.f32.mrb[0].mxu0
    %v237 = vpop.f32.mrb[0].mxu0
    %238 = vdwg.mxu0
    %v239 = vmax.f32 %v193, 0.0
    %v240 = vmax.f32 %v195, 0.0
    %v241 = vmax.f32 %v234, 0.0
    %v242 = vpack.c.bf16 %v239, %v239
    %v243 = vpack.c.bf16 %v240, %v240
    %v244 = vpack.c.bf16 %v241, %v241
    %v245 = vld [vmem:[#allocation2] sm:$0xf]
    %v246 = vld [vmem:[#allocation2 + $0x4] sm:$0xf]
    %v247 = vld [vmem:[#allocation2 + $0x8] sm:$0xf]
    %v248 = vld [vmem:[#allocation2 + $0xc] sm:$0xf]
    %v249 = vld [vmem:[#allocation2 + $0x10] sm:$0xf]
    %v250 = vld [vmem:[#allocation2 + $0x14] sm:$0xf]
    %v251 = vld [vmem:[#allocation2 + $0x18] sm:$0xf]
    %v252 = vld [vmem:[#allocation2 + $0x1c] sm:$0xf]
    %v253 = vld [vmem:[#allocation2 + $0x20] sm:$0xf]
    %v254 = vld [vmem:[#allocation2 + $0x24] sm:$0xf]
    %v255 = vld [vmem:[#allocation2 + $0x28] sm:$0xf]
    %v256 = vld [vmem:[#allocation2 + $0x2c] sm:$0xf]
    %v257 = vld [vmem:[#allocation2 + $0x30] sm:$0xf]
    %v258 = vld [vmem:[#allocation2 + $0x34] sm:$0xf]
    %v259 = vld [vmem:[#allocation2 + $0x38] sm:$0xf]
    %v260 = vld [vmem:[#allocation2 + $0x3c] sm:$0xf]
    %v261 = vld [vmem:[#allocation2 + $0x40] sm:$0xf]
    %v262 = vld [vmem:[#allocation2 + $0x44] sm:$0xf]
    %v263 = vld [vmem:[#allocation2 + $0x48] sm:$0xf]
    %v264 = vld [vmem:[#allocation2 + $0x4c] sm:$0xf]
    %v265 = vld [vmem:[#allocation2 + $0x50] sm:$0xf]
    %v266 = vld [vmem:[#allocation2 + $0x54] sm:$0xf]
    %v267 = vld [vmem:[#allocation2 + $0x58] sm:$0xf]
    %v268 = vld [vmem:[#allocation2 + $0x5c] sm:$0xf]
    %v269 = vld [vmem:[#allocation2 + $0x60] sm:$0xf]
    %v270 = vld [vmem:[#allocation2 + $0x64] sm:$0xf]
    %v271 = vld [vmem:[#allocation2 + $0x68] sm:$0xf]
    %v272 = vld [vmem:[#allocation2 + $0x6c] sm:$0xf]
    %v273 = vld [vmem:[#allocation2 + $0x70] sm:$0xf]
    %v274 = vld [vmem:[#allocation2 + $0x74] sm:$0xf]
    %v275 = vld [vmem:[#allocation2 + $0x78] sm:$0xf]
    %v276 = vld [vmem:[#allocation2 + $0x7c] sm:$0xf]
    %v277 = vld [vmem:[#allocation2 + $0x80] sm:$0xf]
    %v278 = vld [vmem:[#allocation2 + $0x84] sm:$0xf]
    %v279 = vld [vmem:[#allocation2 + $0x88] sm:$0xf]
    %v280 = vld [vmem:[#allocation2 + $0x8c] sm:$0xf]
    %v281 = vld [vmem:[#allocation2 + $0x90] sm:$0xf]
    %v282 = vld [vmem:[#allocation2 + $0x94] sm:$0xf]
    %v283 = vld [vmem:[#allocation2 + $0x98] sm:$0xf]
    %v284 = vld [vmem:[#allocation2 + $0x9c] sm:$0xf]
    %v285 = vld [vmem:[#allocation2 + $0xa0] sm:$0xf]
    %v286 = vld [vmem:[#allocation2 + $0xa4] sm:$0xf]
    %v287 = vld [vmem:[#allocation2 + $0xa8] sm:$0xf]
    %v288 = vld [vmem:[#allocation2 + $0xac] sm:$0xf]
    %v289 = vld [vmem:[#allocation2 + $0xb0] sm:$0xf]
    %v290 = vld [vmem:[#allocation2 + $0xb4] sm:$0xf]
    %v291 = vld [vmem:[#allocation2 + $0xb8] sm:$0xf]
    %v292 = vld [vmem:[#allocation2 + $0xbc] sm:$0xf]
    %v293 = vld [vmem:[%s4] sm:$0x1]
    %v295 = vlaneseq
    %v296 = vshrl.u32 %v295, 7
    %v297 = vsub.s32 0, %v296
    %v298 = vrot.slane %v293, %v297
    %v348 = vunpack.c.l.b16 %v245
    %v349 = vunpack.c.l.b16 %v246
    %v350 = vunpack.c.l.b16 %v247
    %v351 = vunpack.c.l.b16 %v248
    %v352 = vunpack.c.l.b16 %v249
    %v353 = vunpack.c.l.b16 %v250
    %v354 = vunpack.c.l.b16 %v251
    %v355 = vunpack.c.l.b16 %v252
    %v356 = vunpack.c.l.b16 %v253
    %v357 = vunpack.c.l.b16 %v254
    %v358 = vunpack.c.l.b16 %v255
    %v359 = vunpack.c.l.b16 %v256
    %v360 = vunpack.c.l.b16 %v257
    %v361 = vunpack.c.l.b16 %v258
    %v362 = vunpack.c.l.b16 %v259
    %v363 = vunpack.c.l.b16 %v260
    %v364 = vunpack.c.l.b16 %v261
    %v365 = vunpack.c.l.b16 %v262
    %v366 = vunpack.c.l.b16 %v263
    %v367 = vunpack.c.l.b16 %v264
    %v368 = vunpack.c.l.b16 %v265
    %v369 = vunpack.c.l.b16 %v266
    %v370 = vunpack.c.l.b16 %v267
    %v371 = vunpack.c.l.b16 %v268
    %v372 = vunpack.c.l.b16 %v269
    %v373 = vunpack.c.l.b16 %v270
    %v374 = vunpack.c.l.b16 %v271
    %v375 = vunpack.c.l.b16 %v272
    %v376 = vunpack.c.l.b16 %v273
    %v377 = vunpack.c.l.b16 %v274
    %v378 = vunpack.c.l.b16 %v275
    %v379 = vunpack.c.l.b16 %v276
    %v380 = vunpack.c.l.b16 %v277
    %v381 = vunpack.c.l.b16 %v278
    %v382 = vunpack.c.l.b16 %v279
    %v383 = vunpack.c.l.b16 %v280
    %v384 = vunpack.c.l.b16 %v281
    %v385 = vunpack.c.l.b16 %v282
    %v386 = vunpack.c.l.b16 %v283
    %v387 = vunpack.c.l.b16 %v284
    %v388 = vunpack.c.l.b16 %v285
    %v389 = vunpack.c.l.b16 %v286
    %v390 = vunpack.c.l.b16 %v287
    %v391 = vunpack.c.l.b16 %v288
    %v392 = vunpack.c.l.b16 %v289
    %v393 = vunpack.c.l.b16 %v290
    %v394 = vunpack.c.l.b16 %v291
    %v395 = vunpack.c.l.b16 %v292
    %v396 = vpack.c.b16 %v349, %v348
    %v397 = vpack.c.b16 %v351, %v350
    %v398 = vpack.c.b16 %v353, %v352
    %v399 = vpack.c.b16 %v355, %v354
    %v400 = vpack.c.b16 %v357, %v356
    %v401 = vpack.c.b16 %v359, %v358
    %v402 = vpack.c.b16 %v361, %v360
    %v403 = vpack.c.b16 %v363, %v362
    %v404 = vpack.c.b16 %v365, %v364
    %v405 = vpack.c.b16 %v367, %v366
    %v406 = vpack.c.b16 %v369, %v368
    %v407 = vpack.c.b16 %v371, %v370
    %v408 = vpack.c.b16 %v373, %v372
    %v409 = vpack.c.b16 %v375, %v374
    %v410 = vpack.c.b16 %v377, %v376
    %v411 = vpack.c.b16 %v379, %v378
    %v412 = vpack.c.b16 %v381, %v380
    %v413 = vpack.c.b16 %v383, %v382
    %v414 = vpack.c.b16 %v385, %v384
    %v415 = vpack.c.b16 %v387, %v386
    %v416 = vpack.c.b16 %v389, %v388
    %v417 = vpack.c.b16 %v391, %v390
    %v418 = vpack.c.b16 %v393, %v392
    %v419 = vpack.c.b16 %v395, %v394
    %444 = vmatprep.subr.bf16.mxu0 0
    %445 = vmatpush1.bf16.msra.mxu0 %v396
    %446 = vmatprep.subr.bf16.mxu0 0
    %447 = vmatpush1.bf16.msra.mxu0 %v397
    %448 = vmatprep.subr.bf16.mxu0 0
    %449 = vmatpush1.bf16.msra.mxu0 %v398
    %450 = vmatprep.subr.bf16.mxu0 0
    %451 = vmatpush1.bf16.msra.mxu0 %v399
    %452 = vmatprep.subr.bf16.mxu0 0
    %453 = vmatpush1.bf16.msra.mxu0 %v400
    %454 = vmatprep.subr.bf16.mxu0 0
    %455 = vmatpush1.bf16.msra.mxu0 %v401
    %456 = vmatprep.subr.bf16.mxu0 0
    %457 = vmatpush1.bf16.msra.mxu0 %v402
    %458 = vmatprep.subr.bf16.mxu0 0
    %459 = vmatpush1.bf16.msra.mxu0 %v403
    %460 = vmatprep.subr.bf16.mxu0 0
    %461 = vmatpush1.bf16.msra.mxu0 %v404
    %462 = vmatprep.subr.bf16.mxu0 0
    %463 = vmatpush1.bf16.msra.mxu0 %v405
    %464 = vmatprep.subr.bf16.mxu0 0
    %465 = vmatpush1.bf16.msra.mxu0 %v406
    %466 = vmatprep.subr.bf16.mxu0 0
    %467 = vmatpush1.bf16.msra.mxu0 %v407
    %468 = vmatprep.subr.bf16.mxu0 0
    %469 = vmatpush1.bf16.msra.mxu0 %v408
    %470 = vmatprep.subr.bf16.mxu0 0
    %471 = vmatpush1.bf16.msra.mxu0 %v409
    %472 = vmatprep.subr.bf16.mxu0 0
    %473 = vmatpush1.bf16.msra.mxu0 %v410
    %474 = vmatprep.subr.bf16.mxu0 0
    %475 = vmatpush1.bf16.msra.mxu0 %v411
    %476 = vmatprep.mubr.bf16.mxu0 %v243
    %477 = vmatmul.mubr.bf16.gmra.mrb[0].mxu0 %v242
    %v478 = vpop.f32.mrb[0].mxu0
    %v479 = vadd.f32 %v298, %v478
    %v480 = vpop.f32.mrb[0].mxu0
    %v481 = vpop.f32.mrb[0].mxu0
    %v482 = vpop.f32.mrb[0].mxu0
    %483 = vdwg.mxu0
    %484 = vmatprep.subr.bf16.mxu0 0
    %485 = vmatpush1.bf16.msra.mxu0 %v412
    %486 = vmatprep.subr.bf16.mxu0 0
    %487 = vmatpush1.bf16.msra.mxu0 %v413
    %488 = vmatprep.subr.bf16.mxu0 0
    %489 = vmatpush1.bf16.msra.mxu0 %v414
    %490 = vmatprep.subr.bf16.mxu0 0
    %491 = vmatpush1.bf16.msra.mxu0 %v415
    %492 = vmatprep.subr.bf16.mxu0 0
    %493 = vmatpush1.bf16.msra.mxu0 %v416
    %494 = vmatprep.subr.bf16.mxu0 0
    %495 = vmatpush1.bf16.msra.mxu0 %v417
    %496 = vmatprep.subr.bf16.mxu0 0
    %497 = vmatpush1.bf16.msra.mxu0 %v418
    %498 = vmatprep.subr.bf16.mxu0 0
    %499 = vmatpush1.bf16.msra.mxu0 %v419
    %500 = vmatprep.subr.bf16.mxu0 0
    %501 = vmatpush1.bf16.msra.mxu0 0
    %502 = vmatprep.subr.bf16.mxu0 0
    %503 = vmatpush1.bf16.msra.mxu0 0
    %504 = vmatprep.subr.bf16.mxu0 0
    %505 = vmatpush1.bf16.msra.mxu0 0
    %506 = vmatprep.subr.bf16.mxu0 0
    %507 = vmatpush1.bf16.msra.mxu0 0
    %508 = vmatprep.subr.bf16.mxu0 0
    %509 = vmatpush1.bf16.msra.mxu0 0
    %510 = vmatprep.subr.bf16.mxu0 0
    %511 = vmatpush1.bf16.msra.mxu0 0
    %512 = vmatprep.subr.bf16.mxu0 0
    %513 = vmatpush1.bf16.msra.mxu0 0
    %514 = vmatprep.subr.bf16.mxu0 0
    %515 = vmatpush1.bf16.msra.mxu0 0
    %516 = vmatprep.mubr.bf16.mxu0 0
    %517 = vmatmul.mubr.bf16.gmra.mrb[0].mxu0 %v244
    %v518 = vpop.f32.mrb[0].mxu0
    %v519 = vadd.f32 %v479, %v518
    %v520 = vpop.f32.mrb[0].mxu0
    %v521 = vpop.f32.mrb[0].mxu0
    %v522 = vpop.f32.mrb[0].mxu0
    %523 = vdwg.mxu0
    %v524 = vmax.f32 %v519, 0.0
    %v525 = vpack.c.bf16 %v524, %v524
    %v526 = vld [vmem:[#allocation5] sm:$0xf]
    %v527 = vld [vmem:[#allocation5 + $0x4] sm:$0xf]
    %v528 = vld [vmem:[#allocation5 + $0x8] sm:$0xf]
    %v529 = vld [vmem:[#allocation5 + $0xc] sm:$0xf]
    %v530 = vld [vmem:[#allocation5 + $0x10] sm:$0xf]
    %v531 = vld [vmem:[#allocation5 + $0x14] sm:$0xf]
    %v532 = vld [vmem:[#allocation5 + $0x18] sm:$0xf]
    %v533 = vld [vmem:[#allocation5 + $0x1c] sm:$0xf]
    %v534 = vld [vmem:[#allocation5 + $0x20] sm:$0xf]
    %v535 = vld [vmem:[#allocation5 + $0x24] sm:$0xf]
    %v536 = vld [vmem:[#allocation5 + $0x28] sm:$0xf]
    %v537 = vld [vmem:[#allocation5 + $0x2c] sm:$0xf]
    %v538 = vld [vmem:[#allocation5 + $0x30] sm:$0xf]
    %v539 = vld [vmem:[#allocation5 + $0x34] sm:$0xf]
    %v540 = vld [vmem:[#allocation5 + $0x38] sm:$0xf]
    %v541 = vld [vmem:[#allocation5 + $0x3c] sm:$0xf]
    %v542 = vld [vmem:[%s6] sm:$0x1]
    %v544 = vlaneseq
    %v545 = vshrl.u32 %v544, 7
    %v546 = vsub.s32 0, %v545
    %v547 = vrot.slane %v542, %v546
    %v565 = vunpack.c.l.b16 %v526
    %v566 = vunpack.c.l.b16 %v527
    %v567 = vunpack.c.l.b16 %v528
    %v568 = vunpack.c.l.b16 %v529
    %v569 = vunpack.c.l.b16 %v530
    %v570 = vunpack.c.l.b16 %v531
    %v571 = vunpack.c.l.b16 %v532
    %v572 = vunpack.c.l.b16 %v533
    %v573 = vunpack.c.l.b16 %v534
    %v574 = vunpack.c.l.b16 %v535
    %v575 = vunpack.c.l.b16 %v536
    %v576 = vunpack.c.l.b16 %v537
    %v577 = vunpack.c.l.b16 %v538
    %v578 = vunpack.c.l.b16 %v539
    %v579 = vunpack.c.l.b16 %v540
    %v580 = vunpack.c.l.b16 %v541
    %v581 = vpack.c.b16 %v566, %v565
    %v582 = vpack.c.b16 %v568, %v567
    %v583 = vpack.c.b16 %v570, %v569
    %v584 = vpack.c.b16 %v572, %v571
    %v585 = vpack.c.b16 %v574, %v573
    %v586 = vpack.c.b16 %v576, %v575
    %v587 = vpack.c.b16 %v578, %v577
    %v588 = vpack.c.b16 %v580, %v579
    %597 = vmatprep.subr.bf16.mxu0 0
    %598 = vmatpush1.bf16.msra.mxu0 %v581
    %599 = vmatprep.subr.bf16.mxu0 0
    %600 = vmatpush1.bf16.msra.mxu0 %v582
    %601 = vmatprep.subr.bf16.mxu0 0
    %602 = vmatpush1.bf16.msra.mxu0 %v583
    %603 = vmatprep.subr.bf16.mxu0 0
    %604 = vmatpush1.bf16.msra.mxu0 %v584
    %605 = vmatprep.subr.bf16.mxu0 0
    %606 = vmatpush1.bf16.msra.mxu0 %v585
    %607 = vmatprep.subr.bf16.mxu0 0
    %608 = vmatpush1.bf16.msra.mxu0 %v586
    %609 = vmatprep.subr.bf16.mxu0 0
    %610 = vmatpush1.bf16.msra.mxu0 %v587
    %611 = vmatprep.subr.bf16.mxu0 0
    %612 = vmatpush1.bf16.msra.mxu0 %v588
    %613 = vmatprep.subr.bf16.mxu0 0
    %614 = vmatpush1.bf16.msra.mxu0 0
    %615 = vmatprep.subr.bf16.mxu0 0
    %616 = vmatpush1.bf16.msra.mxu0 0
    %617 = vmatprep.subr.bf16.mxu0 0
    %618 = vmatpush1.bf16.msra.mxu0 0
    %619 = vmatprep.subr.bf16.mxu0 0
    %620 = vmatpush1.bf16.msra.mxu0 0
    %621 = vmatprep.subr.bf16.mxu0 0
    %622 = vmatpush1.bf16.msra.mxu0 0
    %623 = vmatprep.subr.bf16.mxu0 0
    %624 = vmatpush1.bf16.msra.mxu0 0
    %625 = vmatprep.subr.bf16.mxu0 0
    %626 = vmatpush1.bf16.msra.mxu0 0
    %627 = vmatprep.subr.bf16.mxu0 0
    %628 = vmatpush1.bf16.msra.mxu0 0
    %629 = vmatprep.mubr.bf16.mxu0 0
    %630 = vmatmul.mubr.bf16.gmra.mrb[0].mxu0 %v525
    %v631 = vpop.f32.mrb[0].mxu0
    %v632 = vadd.f32 %v547, %v631
    %v633 = vpop.f32.mrb[0].mxu0
    %v634 = vpop.f32.mrb[0].mxu0
    %v635 = vpop.f32.mrb[0].mxu0
    %636 = vdwg.mxu0
    %637 = vst [vmem:[#allocation7] sm:$0xff] %v632
    // Predicated region
    $region38: #{encoder_forward.1} parent=1 // pred_check
      _
    $region39: #{encoder_forward.1} parent=1 // pred_check_branch
      %639 = sbr.rel (0) target = $region41
    $region40: #{encoder_forward.1} parent=1 // pred_region
      %s641 = ssub.s32 128, 128
      %642 = vsyncadd [#allocation4], %s641
      %s644 = sshll.u32 [#allocation7], 4
      %s645 = int_to_ptr.vmem [resolvable:$true] %s644
      %647 = dma.vmem_to_hbm [thread:$0]  %s645, 128, %s7, [#allocation4]
    $region41: #{encoder_forward.1} parent=1 // pred_fallthru
      _
    // Predicated region
    $region42: #{encoder_forward.1} parent=1 // pred_check
      _
    $region43: #{encoder_forward.1} parent=1 // pred_check_branch
      %649 = sbr.rel (0) target = $region45
    $region44: #{encoder_forward.1} parent=1 // pred_region
      %650 = dma.done [#allocation4], 128
    $region45: #{encoder_forward.1} parent=1 // pred_fallthru
      _
    %651 = vsyncpa [#allocation3], 1
    %652 = vsyncpa [#allocation6], 1
    %653 = vsyncpa [#allocation4], 1

</llo_original>
